<compile_context>
chip_gen: v7x
topology: tpu7x:2x2x1
jax: 0.10.0
libtpu: 0.0.40
codegen_flags: <defaults>
</compile_context>

<pallas_src>
import functools

import jax
import jax.numpy as jnp
from jax import lax
from jax.experimental import pallas as pl
from jax.experimental.pallas import tpu as pltpu


# ---------------------------------------------------------------------------
# Pass 1: partial Gram matrix (X^T X) and column sums of X per grid block.
# ---------------------------------------------------------------------------
def stats_kernel(x_ref, gram_ref, xsum_ref):
    xb = x_ref[...]                                             # (bm, PCin) f32
    g = lax.dot_general(xb, xb, (((0,), (0,)), ((), ())),
                        preferred_element_type=jnp.float32)     # (PCin, PCin)
    gram_ref[...] = g[None]                                     # (1, PCin, PCin)
    xsum_ref[...] = jnp.sum(xb, axis=0, keepdims=True)[None]    # (1, 1, PCin)


# ---------------------------------------------------------------------------
# Pass 2: fused conv-transpose (BN scale folded into weight) + shift + ELU.
# ---------------------------------------------------------------------------
def convt_bn_elu_kernel(x_ref, w_ref, shift_ref, o_ref):
    z = jnp.dot(x_ref[...], w_ref[...], preferred_element_type=jnp.float32)
    z = z + shift_ref[...]
    o_ref[...] = jnp.where(z > 0.0, z, jnp.exp(z) - 1.0)        # ELU, alpha = 1


def _block_diag(w_flat, p):
    """(Cin, C8) -> block-diagonal (p*Cin, p*C8) with p copies of w_flat."""
    cin, c8 = w_flat.shape
    eye = jnp.eye(p, dtype=w_flat.dtype)
    return jnp.einsum("pq,cf->pcqf", eye, w_flat).reshape(p * cin, p * c8)


def _pick_block_rows(m_rows, pcin, pc8, requested):
    """Largest multiple-of-8 row tile dividing m_rows, within a VMEM budget."""
    lane, sub = 128, 8
    in_lanes = -(-pcin // lane) * lane
    out_lanes = -(-pc8 // lane) * lane
    row_bytes = 4 * (in_lanes + out_lanes)
    budget = 16 * 1024 * 1024                   # double-buffered in+out tiles
    cap = max(sub, budget // (2 * row_bytes))
    bm = max(sub, min(requested, cap, m_rows))
    bm -= bm % sub
    while m_rows % bm:
        bm -= sub
    return bm


@functools.partial(jax.jit, static_argnames=("eps", "block_rows"))
def transition_up_3d(x, w, gamma, beta, *, eps=1e-5, block_rows=1024):
    """x: [N, Cin, D, H, W] (NCDHW).  w: [Cin, Cout, 2, 2, 2] (ConvTranspose3d
    weight layout).  gamma/beta: [Cout] BatchNorm3d affine params.
    Returns [N, Cout, 2D, 2H, 2W]."""
    N, Cin, D, H, W = x.shape
    Cout = w.shape[1]
    C8 = Cout * 8
    M = N * D * H * W

    # Lane-packing factor: pack P consecutive spatial rows so the output last
    # dim is (up to) 128 lanes -> dense, unmasked stores. P=1 when C8 >= 128.
    if C8 >= 128:
        P = 1
    else:
        P = max(1, min(8, 128 // C8))
        while M % P:
            P -= 1
    M4 = M // P
    PCin, PC8 = P * Cin, P * C8

    # Pad packed rows to a multiple of the sublane count; zero rows contribute
    # nothing to the stats and are sliced off the output.
    Mp = -(-M4 // 8) * 8
    bm = _pick_block_rows(Mp, PCin, PC8, block_rows)
    grid = (Mp // bm,)
    nblk = grid[0]

    # Channel-last, P-packed input.  This transpose is the only wrapper-side
    # relayout of x and is ~8x smaller than the output tensor.
    x4 = (
        jnp.transpose(x, (0, 2, 3, 4, 1))
        .reshape(M, Cin)
        .astype(jnp.float32)
        .reshape(M4, PCin)
    )
    if Mp != M4:
        x4 = jnp.pad(x4, ((0, Mp - M4), (0, 0)))
    w_flat = w.reshape(Cin, C8).astype(jnp.float32)

    # ---- pass 1: per-block partial Gram matrix + column sums of x ----------
    vparams = pltpu.CompilerParams(
        dimension_semantics=("parallel",),
        vmem_limit_bytes=48 * 1024 * 1024,
    )
    part_gram, part_xsum = pl.pallas_call(
        stats_kernel,
        out_shape=(
            jax.ShapeDtypeStruct((nblk, PCin, PCin), jnp.float32),
            jax.ShapeDtypeStruct((nblk, 1, PCin), jnp.float32),
        ),
        grid_spec=pltpu.PrefetchScalarGridSpec(
            num_scalar_prefetch=0,
            grid=grid,
            in_specs=[pl.BlockSpec((bm, PCin), lambda i: (i, 0))],
            out_specs=[
                pl.BlockSpec((1, PCin, PCin), lambda i: (i, 0, 0)),
                pl.BlockSpec((1, 1, PCin), lambda i: (i, 0, 0)),
            ],
        ),
        compiler_params=vparams,
    )(x4)

    # ---- batch-norm statistics (training-mode, biased variance) -----------
    gram_p = part_gram.sum(axis=0)                    # (PCin, PCin) packed Gram
    xsum_p = part_xsum.sum(axis=(0, 1))               # (PCin,)
    # Sum the P diagonal Cin x Cin blocks to recover the true Gram of x.
    G = gram_p.reshape(P, Cin, P, Cin)
    G = sum(G[g, :, g, :] for g in range(P)) if P > 1 else G[0, :, 0, :]
    colsum_x = xsum_p.reshape(P, Cin).sum(axis=0)     # (Cin,)

    # Per output channel the element count is N * 2D * 2H * 2W = 8 * M.
    # NOTE: var = E[y^2] - E[y]^2 can cancel when |mean| >> std; clamped at 0.
    count = jnp.float32(8 * M)
    ysum_col = colsum_x @ w_flat                      # (C8,)  sum_m y[:, f]
    ysq_col = jnp.sum(w_flat * (G @ w_flat), axis=0)  # (C8,)  sum_m y[:, f]^2
    ch_sum = ysum_col.reshape(Cout, 8).sum(axis=1)
    ch_sq = ysq_col.reshape(Cout, 8).sum(axis=1)
    mean = ch_sum / count
    var = jnp.maximum(ch_sq / count - mean * mean, 0.0)
    inv_std = lax.rsqrt(var + eps)
    scale_c = gamma.astype(jnp.float32) * inv_std
    shift_c = beta.astype(jnp.float32) - mean * scale_c
    scale_col = jnp.repeat(scale_c, 8)                # (C8,)
    shift_col = jnp.repeat(shift_c, 8)
    # Fold the BN scale into the weight, then build the block-diagonal packed
    # weight (the only block-diag construction in the whole function).
    wbd_scaled = _block_diag(w_flat * scale_col[None, :], P)     # (PCin, PC8)
    shift_pack = jnp.tile(shift_col, P).reshape(1, PC8)

    # ---- pass 2: recompute matmul, fused BN + ELU, single lane-dense write --
    out4 = pl.pallas_call(
        convt_bn_elu_kernel,
        out_shape=jax.ShapeDtypeStruct((Mp, PC8), jnp.float32),
        grid_spec=pltpu.PrefetchScalarGridSpec(
            num_scalar_prefetch=0,
            grid=grid,
            in_specs=[
                pl.BlockSpec((bm, PCin), lambda i: (i, 0)),
                pl.BlockSpec((PCin, PC8), lambda i: (0, 0)),
                pl.BlockSpec((1, PC8), lambda i: (0, 0)),
            ],
            out_specs=pl.BlockSpec((bm, PC8), lambda i: (i, 0)),
        ),
        compiler_params=vparams,
    )(x4, wbd_scaled, shift_pack)

    if Mp != M4:
        out4 = out4[:M4]

    # Scatter the 2x2x2 kernel positions back into the upsampled NCDHW volume.
    # TODO(synk): this final interleave is a standalone XLA transpose (one extra
    # read+write of the output); a channel-last consumer (N,2D,2H,2W,Cout) would
    # avoid it entirely, but NCDHW is kept to match the PyTorch module.
    out = out4.reshape(N, D, H, W, Cout, 2, 2, 2)
    out = jnp.transpose(out, (0, 4, 1, 5, 2, 6, 3, 7))
    return out.reshape(N, Cout, 2 * D, 2 * H, 2 * W)


# ---------------------------------------------------------------------------
# pure-JAX reference (same math, independent of Pallas) for a sanity check
# ---------------------------------------------------------------------------
def reference(x, w, gamma, beta, eps=1e-5):
    N, Cin, D, H, W = x.shape
    Cout = w.shape[1]
    y = jnp.einsum("ncdhw,cokpq->nodkhpwq", x, w)          # N,Cout,D,2,H,2,W,2
    y = y.reshape(N, Cout, 2 * D, 2 * H, 2 * W)
    mean = y.mean(axis=(0, 2, 3, 4), keepdims=True)
    var = ((y - mean) ** 2).mean(axis=(0, 2, 3, 4), keepdims=True)
    z = (y - mean) / jnp.sqrt(var + eps)
    z = z * gamma.reshape(1, Cout, 1, 1, 1) + beta.reshape(1, Cout, 1, 1, 1)
    return jnp.where(z > 0.0, z, jnp.exp(z) - 1.0)


if __name__ == "__main__":
    key = jax.random.PRNGKey(0)
    k_x, k_w, k_g, k_b = jax.random.split(key, 4)

    N, Cin, Cout, D, H, W = 2, 4, 4, 8, 8, 8
    x = jax.random.normal(k_x, (N, Cin, D, H, W), dtype=jnp.float32)
    # ConvTranspose3d weight: [in_channels, out_channels, 2, 2, 2]
    w = jax.random.normal(k_w, (Cin, Cout, 2, 2, 2), dtype=jnp.float32) * 0.1
    # BatchNorm3d affine params (deterministic, non-trivial)
    gamma = 1.0 + 0.1 * jax.random.normal(k_g, (Cout,), dtype=jnp.float32)
    beta = 0.1 * jax.random.normal(k_b, (Cout,), dtype=jnp.float32)

    out = transition_up_3d(x, w, gamma, beta)
    out = jax.block_until_ready(out)
    assert out.shape == (N, Cout, 2 * D, 2 * H, 2 * W), out.shape

    ref = reference(x, w, gamma, beta)
    assert jnp.allclose(out, ref, atol=5e-4, rtol=5e-4), (
        float(jnp.max(jnp.abs(out - ref))))

    print("KERNEL_OK")
</pallas_src>

<mosaic_0001>
module attributes {stable_mosaic.version = 11 : i64} {
  func.func @stats_kernel(%arg0: i32, %arg1: memref<256x16xf32, #tpu.memory_space<vmem>>, %arg2: memref<1x16x16xf32, #tpu.memory_space<vmem>>, %arg3: memref<1x1x16xf32, #tpu.memory_space<vmem>>) attributes {dimension_semantics = [#tpu.dimension_semantics<parallel>], iteration_bounds = array<i64: 1>, scalar_prefetch = 0 : i64, scratch_operands = 0 : i64, tpu.core_type = #tpu.core_type<tc>, window_params = [{transform_indices = @transform_0, window_bounds = array<i64: 256, 16>}, {transform_indices = @transform_1, window_bounds = array<i64: 1, 16, 16>}, {transform_indices = @transform_2, window_bounds = array<i64: 1, 1, 16>}]} {
    %c0 = arith.constant 0 : index
    %c0_0 = arith.constant 0 : index
    %0 = vector.load %arg1[%c0, %c0_0] : memref<256x16xf32, #tpu.memory_space<vmem>>, vector<256x16xf32>
    %cst = arith.constant dense<0.000000e+00> : vector<16x16xf32>
    %1 = tpu.matmul %0, %0, %cst {dimension_numbers = #tpu.dot_dimension_numbers<[0], [0], [1], [1], [0, 1, 1, 1], [], []>} : vector<256x16xf32>, vector<256x16xf32>, vector<16x16xf32> -> vector<16x16xf32>
    %2 = vector.shape_cast %1 : vector<16x16xf32> to vector<1x16x16xf32>
    %c0_1 = arith.constant 0 : index
    %c0_2 = arith.constant 0 : index
    %c0_3 = arith.constant 0 : index
    %3 = vector.load %arg2[%c0_1, %c0_2, %c0_3] : memref<1x16x16xf32, #tpu.memory_space<vmem>>, vector<1x16x16xf32>
    tpu.vector_store %arg2[%c0_1, %c0_2, %c0_3], %2 {strides = array<i32>} : memref<1x16x16xf32, #tpu.memory_space<vmem>>, vector<1x16x16xf32>,
    %cst_4 = arith.constant dense<0.000000e+00> : vector<16xf32>
    %4 = vector.multi_reduction <add>, %0, %cst_4 [0] : vector<256x16xf32> to vector<16xf32>
    %5 = vector.shape_cast %4 : vector<16xf32> to vector<1x16xf32>
    %6 = vector.shape_cast %5 : vector<1x16xf32> to vector<1x1x16xf32>
    %c0_5 = arith.constant 0 : index
    %c0_6 = arith.constant 0 : index
    %c0_7 = arith.constant 0 : index
    %7 = vector.load %arg3[%c0_5, %c0_6, %c0_7] : memref<1x1x16xf32, #tpu.memory_space<vmem>>, vector<1x1x16xf32>
    tpu.vector_store %arg3[%c0_5, %c0_6, %c0_7], %6 {strides = array<i32>} : memref<1x1x16xf32, #tpu.memory_space<vmem>>, vector<1x1x16xf32>,
    return
  }
  func.func @transform_0(%arg0: i32) -> (i32, i32) {
    %c0_i32 = arith.constant 0 : i32
    %c0_i32_0 = arith.constant 0 : i32
    return %arg0, %c0_i32 : i32, i32
  }
  func.func @transform_1(%arg0: i32) -> (i32, i32, i32) {
    %c0_i32 = arith.constant 0 : i32
    %c0_i32_0 = arith.constant 0 : i32
    %c0_i32_1 = arith.constant 0 : i32
    return %arg0, %c0_i32, %c0_i32_0 : i32, i32, i32
  }
  func.func @transform_2(%arg0: i32) -> (i32, i32, i32) {
    %c0_i32 = arith.constant 0 : i32
    %c0_i32_0 = arith.constant 0 : i32
    %c0_i32_1 = arith.constant 0 : i32
    return %arg0, %c0_i32, %c0_i32_0 : i32, i32, i32
  }
}

module attributes {stable_mosaic.version = 11 : i64} {
  func.func @convt_bn_elu_kernel(%arg0: i32, %arg1: memref<256x16xf32, #tpu.memory_space<vmem>>, %arg2: memref<16x128xf32, #tpu.memory_space<vmem>>, %arg3: memref<1x128xf32, #tpu.memory_space<vmem>>, %arg4: memref<256x128xf32, #tpu.memory_space<vmem>>) attributes {dimension_semantics = [#tpu.dimension_semantics<parallel>], iteration_bounds = array<i64: 1>, scalar_prefetch = 0 : i64, scratch_operands = 0 : i64, tpu.core_type = #tpu.core_type<tc>, window_params = [{transform_indices = @transform_0, window_bounds = array<i64: 256, 16>}, {pipeline_mode = #tpu.pipeline_mode<synchronous>, transform_indices = @transform_1, window_bounds = array<i64: 16, 128>}, {pipeline_mode = #tpu.pipeline_mode<synchronous>, transform_indices = @transform_2, window_bounds = array<i64: 1, 128>}, {transform_indices = @transform_3, window_bounds = array<i64: 256, 128>}]} {
    %c0 = arith.constant 0 : index
    %c0_0 = arith.constant 0 : index
    %0 = vector.load %arg1[%c0, %c0_0] : memref<256x16xf32, #tpu.memory_space<vmem>>, vector<256x16xf32>
    %c0_1 = arith.constant 0 : index
    %c0_2 = arith.constant 0 : index
    %1 = vector.load %arg2[%c0_1, %c0_2] : memref<16x128xf32, #tpu.memory_space<vmem>>, vector<16x128xf32>
    %cst = arith.constant dense<0.000000e+00> : vector<256x128xf32>
    %2 = tpu.matmul %0, %1, %cst {dimension_numbers = #tpu.dot_dimension_numbers<[1], [0], [0], [1], [0, 0, 1, 1], [], []>} : vector<256x16xf32>, vector<16x128xf32>, vector<256x128xf32> -> vector<256x128xf32>
    %c0_3 = arith.constant 0 : index
    %c0_4 = arith.constant 0 : index
    %3 = vector.load %arg3[%c0_3, %c0_4] : memref<1x128xf32, #tpu.memory_space<vmem>>, vector<1x128xf32>
    %4 = vector.broadcast %3 : vector<1x128xf32> to vector<256x128xf32>
    %5 = arith.addf %2, %4 : vector<256x128xf32>
    %cst_5 = arith.constant 0.000000e+00 : f32
    %6 = vector.broadcast %cst_5 : f32 to vector<256x128xf32>
    %7 = arith.cmpf ogt, %5, %6 : vector<256x128xf32>
    %8 = math.exp %5 : vector<256x128xf32>
    %cst_6 = arith.constant 1.000000e+00 : f32
    %9 = vector.broadcast %cst_6 : f32 to vector<256x128xf32>
    %10 = arith.subf %8, %9 : vector<256x128xf32>
    %11 = arith.select %7, %5, %10 : vector<256x128xi1>, vector<256x128xf32>
    %c0_7 = arith.constant 0 : index
    %c0_8 = arith.constant 0 : index
    %12 = vector.load %arg4[%c0_7, %c0_8] : memref<256x128xf32, #tpu.memory_space<vmem>>, vector<256x128xf32>
    tpu.vector_store %arg4[%c0_7, %c0_8], %11 {strides = array<i32>} : memref<256x128xf32, #tpu.memory_space<vmem>>, vector<256x128xf32>,
    return
  }
  func.func @transform_0(%arg0: i32) -> (i32, i32) {
    %c0_i32 = arith.constant 0 : i32
    %c0_i32_0 = arith.constant 0 : i32
    return %arg0, %c0_i32 : i32, i32
  }
  func.func @transform_1(%arg0: i32) -> (i32, i32) {
    %c0_i32 = arith.constant 0 : i32
    %c0_i32_0 = arith.constant 0 : i32
    %c0_i32_1 = arith.constant 0 : i32
    return %c0_i32, %c0_i32_0 : i32, i32
  }
  func.func @transform_2(%arg0: i32) -> (i32, i32) {
    %c0_i32 = arith.constant 0 : i32
    %c0_i32_0 = arith.constant 0 : i32
    %c0_i32_1 = arith.constant 0 : i32
    return %c0_i32, %c0_i32_0 : i32, i32
  }
  func.func @transform_3(%arg0: i32) -> (i32, i32) {
    %c0_i32 = arith.constant 0 : i32
    %c0_i32_0 = arith.constant 0 : i32
    return %arg0, %c0_i32 : i32, i32
  }
}

</mosaic_0001>

<llo_original>
// kernel: tile.5
$region0: #{tile.5}
  %s0 = inlined_call_operand.vmem [shape: f32[4,8], index: 0, kind: input, shape index: {}]
  %s1 = inlined_call_operand.vmem [shape: f32[32], index: 1, kind: output, shape index: {}]
  $region1: #{tile.5} parent=0
    #allocation0 [shape = 'u8[4096]{0}', space=vmem, size = 0x1000, scoped, tag = 'scoped mem for output reshape']
    #allocation1 [shape = 'u8[4096]{0}', space=vmem, size = 0x1000, scoped, tag = 'scoped mem for input reshape']
    %s3 = sshllo.u32 0, 4
    %v4 = vld [vmem:[%s0] sm:%s3]
    %5 = vst [vmem:[#allocation1] sm:%s3] %v4
    %v6 = vld [vmem:[#allocation1] sm:$0x1]
    %vm7 = vcmask 64512
    %8 = vst.msk [vmem:[#allocation0] sm:$0x1] %vm7, %v6
    %s9 = scalar_lea.vmem [#allocation1], 3
    %v10 = vld [vmem:[%s9] sm:$0x1]
    %11 = vrot.lane.b32.xlu0 %v10, 24
    %v12 = vpop.permute.xlu0 %11
    %vm13 = vcmask 261312
    %14 = vst.msk [vmem:[#allocation0] sm:$0x1] %vm13, %v12
    %s15 = scalar_lea.vmem [#allocation1], 2
    %v16 = vld [vmem:[%s15] sm:$0x1]
    %17 = vrot.lane.b32.xlu0 %v16, 16
    %v18 = vpop.permute.xlu0 %17
    %vm19 = vcmask 195712
    %20 = vst.msk [vmem:[#allocation0] sm:$0x1] %vm19, %v18
    %s21 = scalar_lea.vmem [#allocation1], 1
    %v22 = vld [vmem:[%s21] sm:$0x1]
    %23 = vrot.lane.b32.xlu0 %v22, 8
    %v24 = vpop.permute.xlu0 %23
    %vm25 = vcmask 130112
    %26 = vst.msk [vmem:[#allocation0] sm:$0x1] %vm25, %v24
    %s28 = sshllo.u32 0, 1
    %v30 = vld [vmem:[#allocation0] sm:%s28]
    %s31 = sshllo.u32 0, 1
    %32 = vst [vmem:[%s1] sm:%s31] %v30

// kernel: tile.6
$region0: #{tile.6}
  #allocation0 [shape = 's32[1]{0}', space=sflag, size = 0x4, scoped, tag = 'scoped memory for tile.6']
  %s0 = inlined_call_operand.vmem [shape: f32[32], index: 0, kind: input, shape index: {}]
  %s1 = inlined_call_operand.vmem [shape: f32[4,32], index: 1, kind: output, shape index: {}]
  // Predicated region
  $region2: #{tile.6} parent=0 // pred_check
    _
  $region3: #{tile.6} parent=0 // pred_check_branch
    %3 = sbr.rel (0) target = $region5
  $region4: #{tile.6} parent=0 // pred_region
    _
  $region5: #{tile.6} parent=0 // pred_fallthru
    _
  %v4 = vld [vmem:[%s0] ss:$0 sm:$0xff]
  %5 = vst [vmem:[%s1] sm:$0xf] %v4

// kernel: tile.7
$region0: #{tile.7}
  %s0 = inlined_call_operand.vmem [shape: f32[4,32], index: 0, kind: input, shape index: {}]
  %s1 = inlined_call_operand.vmem [shape: f32[1,128], index: 1, kind: output, shape index: {}]
  $region1: #{tile.7} parent=0
    #allocation0 [shape = 'u8[4096]{0}', space=vmem, size = 0x1000, scoped, tag = 'scoped mem for output reshape']
    #allocation1 [shape = 'u8[4096]{0}', space=vmem, size = 0x1000, scoped, tag = 'scoped mem for input reshape']
    %s3 = sshllo.u32 0, 4
    %v4 = vld [vmem:[%s0] sm:%s3]
    %5 = vst [vmem:[#allocation1] sm:%s3] %v4
    %v6 = vld [vmem:[#allocation1] sm:$0x1]
    %vm7 = vcmask 261120
    %8 = vst.msk [vmem:[#allocation0] sm:$0x1] %vm7, %v6
    %s9 = scalar_lea.vmem [#allocation1], 3
    %v10 = vld [vmem:[%s9] sm:$0x1]
    %11 = vrot.lane.b32.xlu0 %v10, 96
    %v12 = vpop.permute.xlu0 %11
    %vm13 = vcmask 1048320
    %14 = vst.msk [vmem:[#allocation0] sm:$0x1] %vm13, %v12
    %s15 = scalar_lea.vmem [#allocation1], 2
    %v16 = vld [vmem:[%s15] sm:$0x1]
    %17 = vrot.lane.b32.xlu0 %v16, 64
    %v18 = vpop.permute.xlu0 %17
    %vm19 = vcmask 785920
    %20 = vst.msk [vmem:[#allocation0] sm:$0x1] %vm19, %v18
    %s21 = scalar_lea.vmem [#allocation1], 1
    %v22 = vld [vmem:[%s21] sm:$0x1]
    %23 = vrot.lane.b32.xlu0 %v22, 32
    %v24 = vpop.permute.xlu0 %23
    %vm25 = vcmask 523520
    %26 = vst.msk [vmem:[#allocation0] sm:$0x1] %vm25, %v24
    %s28 = sshllo.u32 0, 1
    %v30 = vld [vmem:[#allocation0] sm:%s28]
    %s31 = sshllo.u32 0, 1
    %32 = vst [vmem:[%s1] sm:%s31] %v30

// kernel: transition_up_3d.2
$region0: #{transition_up_3d.2}
  #allocation0 [shape = 'u32[]', space=smem, size = 0x4, offset = 0x4, fixed_abs, tag = 'smem constant byte address 0x4 - core index']
  #allocation1 [shape = 'u32[144,128]{1,0:T(1,128)}', space=vmem, size = 0x12000, scoped, tag = 'internal scratch']
  %s0 = inlined_call_operand.vmem [shape: f32[256,16], index: 0, kind: input, shape index: {}]
  %s1 = inlined_call_operand.vmem [shape: f32[1,16,16], index: 1, kind: output, shape index: {0}]
  %s2 = inlined_call_operand.vmem [shape: f32[1,1,16], index: 2, kind: output, shape index: {1}]
  %3 = xla_tuple %s1, %s2
  %s4 = sld [smem:[#allocation0]]
  $region22: #{transition_up_3d.2} parent=0
    _
  %s6 = ssub.s32 1, %s4
  %s7 = scalar_select 0, %s6, %s4
  // Predicated region
  $region2: #{transition_up_3d.2} parent=0 // pred_check
    _
  $region3: #{transition_up_3d.2} parent=0 // pred_check_branch
    %9 = sbr.rel (0) target = $region5
  $region4: #{transition_up_3d.2} parent=0 // pred_region
    _
  $region5: #{transition_up_3d.2} parent=0 // pred_fallthru
    _
  %v10 = vld [vmem:[%s0] sm:$0xff]
  %v11 = vld [vmem:[%s0 + $0x8] sm:$0xff]
  %v12 = vld [vmem:[%s0 + $0x10] sm:$0xff]
  %v13 = vld [vmem:[%s0 + $0x18] sm:$0xff]
  %v14 = vld [vmem:[%s0 + $0x20] sm:$0xff]
  %v15 = vld [vmem:[%s0 + $0x28] sm:$0xff]
  %v16 = vld [vmem:[%s0 + $0x30] sm:$0xff]
  %v17 = vld [vmem:[%s0 + $0x38] sm:$0xff]
  %v18 = vld [vmem:[%s0 + $0x40] sm:$0xff]
  %v19 = vld [vmem:[%s0 + $0x48] sm:$0xff]
  %v20 = vld [vmem:[%s0 + $0x50] sm:$0xff]
  %v21 = vld [vmem:[%s0 + $0x58] sm:$0xff]
  %v22 = vld [vmem:[%s0 + $0x60] sm:$0xff]
  %v23 = vld [vmem:[%s0 + $0x68] sm:$0xff]
  %v24 = vld [vmem:[%s0 + $0x70] sm:$0xff]
  %v25 = vld [vmem:[%s0 + $0x78] sm:$0xff]
  %v26 = vld [vmem:[%s0 + $0x80] sm:$0xff]
  %v27 = vld [vmem:[%s0 + $0x88] sm:$0xff]
  %v28 = vld [vmem:[%s0 + $0x90] sm:$0xff]
  %v29 = vld [vmem:[%s0 + $0x98] sm:$0xff]
  %v30 = vld [vmem:[%s0 + $0xa0] sm:$0xff]
  %v31 = vld [vmem:[%s0 + $0xa8] sm:$0xff]
  %v32 = vld [vmem:[%s0 + $0xb0] sm:$0xff]
  %v33 = vld [vmem:[%s0 + $0xb8] sm:$0xff]
  %v34 = vld [vmem:[%s0 + $0xc0] sm:$0xff]
  %v35 = vld [vmem:[%s0 + $0xc8] sm:$0xff]
  %v36 = vld [vmem:[%s0 + $0xd0] sm:$0xff]
  %v37 = vld [vmem:[%s0 + $0xd8] sm:$0xff]
  %v38 = vld [vmem:[%s0 + $0xe0] sm:$0xff]
  %v39 = vld [vmem:[%s0 + $0xe8] sm:$0xff]
  %v40 = vld [vmem:[%s0 + $0xf0] sm:$0xff]
  %v41 = vld [vmem:[%s0 + $0xf8] sm:$0xff]
  %42 = vxpose.xlu0.b32.start [1/16] %v10, 128
  %43 = vxpose.xlu0.b32.cont [2/16] %v11, 128
  %44 = vxpose.xlu0.b32.cont [3/16] %v12, 128
  %45 = vxpose.xlu0.b32.cont [4/16] %v13, 128
  %46 = vxpose.xlu0.b32.cont [5/16] %v14, 128
  %47 = vxpose.xlu0.b32.cont [6/16] %v15, 128
  %48 = vxpose.xlu0.b32.cont [7/16] %v16, 128
  %49 = vxpose.xlu0.b32.cont [8/16] %v17, 128
  %50 = vxpose.xlu0.b32.cont [9/16] %v18, 128
  %51 = vxpose.xlu0.b32.cont [10/16] %v19, 128
  %52 = vxpose.xlu0.b32.cont [11/16] %v20, 128
  %53 = vxpose.xlu0.b32.cont [12/16] %v21, 128
  %54 = vxpose.xlu0.b32.cont [13/16] %v22, 128
  %55 = vxpose.xlu0.b32.cont [14/16] %v23, 128
  %56 = vxpose.xlu0.b32.cont [15/16] %v24, 128
  %57 = vxpose.xlu0.b32.end [16/16] %v25, 128
  %v58 = vpop.trf.xlu0
  %v59 = vpop.trf.xlu0
  %v60 = vpop.trf.xlu0
  %v61 = vpop.trf.xlu0
  %v62 = vpop.trf.xlu0
  %v63 = vpop.trf.xlu0
  %v64 = vpop.trf.xlu0
  %v65 = vpop.trf.xlu0
  %v66 = vpop.trf.xlu0
  %v67 = vpop.trf.xlu0
  %v68 = vpop.trf.xlu0
  %v69 = vpop.trf.xlu0
  %v70 = vpop.trf.xlu0
  %v71 = vpop.trf.xlu0
  %v72 = vpop.trf.xlu0
  %v73 = vpop.trf.xlu0
  %74 = vxpose.xlu0.b32.start [1/16] %v26, 128
  %75 = vxpose.xlu0.b32.cont [2/16] %v27, 128
  %76 = vxpose.xlu0.b32.cont [3/16] %v28, 128
  %77 = vxpose.xlu0.b32.cont [4/16] %v29, 128
  %78 = vxpose.xlu0.b32.cont [5/16] %v30, 128
  %79 = vxpose.xlu0.b32.cont [6/16] %v31, 128
  %80 = vxpose.xlu0.b32.cont [7/16] %v32, 128
  %81 = vxpose.xlu0.b32.cont [8/16] %v33, 128
  %82 = vxpose.xlu0.b32.cont [9/16] %v34, 128
  %83 = vxpose.xlu0.b32.cont [10/16] %v35, 128
  %84 = vxpose.xlu0.b32.cont [11/16] %v36, 128
  %85 = vxpose.xlu0.b32.cont [12/16] %v37, 128
  %86 = vxpose.xlu0.b32.cont [13/16] %v38, 128
  %87 = vxpose.xlu0.b32.cont [14/16] %v39, 128
  %88 = vxpose.xlu0.b32.cont [15/16] %v40, 128
  %89 = vxpose.xlu0.b32.end [16/16] %v41, 128
  %v90 = vpop.trf.xlu0
  %v91 = vpop.trf.xlu0
  %v92 = vpop.trf.xlu0
  %v93 = vpop.trf.xlu0
  %v94 = vpop.trf.xlu0
  %v95 = vpop.trf.xlu0
  %v96 = vpop.trf.xlu0
  %v97 = vpop.trf.xlu0
  %v98 = vpop.trf.xlu0
  %v99 = vpop.trf.xlu0
  %v100 = vpop.trf.xlu0
  %v101 = vpop.trf.xlu0
  %v102 = vpop.trf.xlu0
  %v103 = vpop.trf.xlu0
  %v104 = vpop.trf.xlu0
  %v105 = vpop.trf.xlu0
  %106 = vmatprep.subr.mxu0 0.0
  %107 = vmatpush1.msra.mxu0 %v10
  %108 = vmatprep.subr.mxu0 0.0
  %109 = vmatpush1.msra.mxu0 %v11
  %110 = vmatprep.subr.mxu0 0.0
  %111 = vmatpush1.msra.mxu0 %v12
  %112 = vmatprep.subr.mxu0 0.0
  %113 = vmatpush1.msra.mxu0 %v13
  %114 = vmatprep.subr.mxu0 0.0
  %115 = vmatpush1.msra.mxu0 %v14
  %116 = vmatprep.subr.mxu0 0.0
  %117 = vmatpush1.msra.mxu0 %v15
  %118 = vmatprep.subr.mxu0 0.0
  %119 = vmatpush1.msra.mxu0 %v16
  %120 = vmatprep.subr.mxu0 0.0
  %121 = vmatpush1.msra.mxu0 %v17
  %122 = vmatprep.subr.mxu0 0.0
  %123 = vmatpush1.msra.mxu0 %v18
  %124 = vmatprep.subr.mxu0 0.0
  %125 = vmatpush1.msra.mxu0 %v19
  %126 = vmatprep.subr.mxu0 0.0
  %127 = vmatpush1.msra.mxu0 %v20
  %128 = vmatprep.subr.mxu0 0.0
  %129 = vmatpush1.msra.mxu0 %v21
  %130 = vmatprep.subr.mxu0 0.0
  %131 = vmatpush1.msra.mxu0 %v22
  %132 = vmatprep.subr.mxu0 0.0
  %133 = vmatpush1.msra.mxu0 %v23
  %134 = vmatprep.subr.mxu0 0.0
  %135 = vmatpush1.msra.mxu0 %v24
  %136 = vmatprep.subr.mxu0 0.0
  %137 = vmatpush1.msra.mxu0 %v25
  %138 = vmatprep.subr.mxu0 0.0
  %139 = vmatpush1.msra.mxu0 %v26
  %140 = vmatprep.subr.mxu0 0.0
  %141 = vmatpush1.msra.mxu0 %v27
  %142 = vmatprep.subr.mxu0 0.0
  %143 = vmatpush1.msra.mxu0 %v28
  %144 = vmatprep.subr.mxu0 0.0
  %145 = vmatpush1.msra.mxu0 %v29
  %146 = vmatprep.subr.mxu0 0.0
  %147 = vmatpush1.msra.mxu0 %v30
  %148 = vmatprep.subr.mxu0 0.0
  %149 = vmatpush1.msra.mxu0 %v31
  %150 = vmatprep.subr.mxu0 0.0
  %151 = vmatpush1.msra.mxu0 %v32
  %152 = vmatprep.subr.mxu0 0.0
  %153 = vmatpush1.msra.mxu0 %v33
  %154 = vmatprep.subr.mxu0 0.0
  %155 = vmatpush1.msra.mxu0 %v34
  %156 = vmatprep.subr.mxu0 0.0
  %157 = vmatpush1.msra.mxu0 %v35
  %158 = vmatprep.subr.mxu0 0.0
  %159 = vmatpush1.msra.mxu0 %v36
  %160 = vmatprep.subr.mxu0 0.0
  %161 = vmatpush1.msra.mxu0 %v37
  %162 = vmatprep.subr.mxu0 0.0
  %163 = vmatpush1.msra.mxu0 %v38
  %164 = vmatprep.subr.mxu0 0.0
  %165 = vmatpush1.msra.mxu0 %v39
  %166 = vmatprep.subr.mxu0 0.0
  %167 = vmatpush1.msra.mxu0 %v40
  %168 = vmatprep.subr.mxu0 0.0
  %169 = vmatpush1.msra.mxu0 %v41
  %170 = vmatprep.mubr.f32.mxu0 %v90
  %171 = vmatmul.mubr.f32.gmra.mrb[0].mxu0 %v58
  %v172 = vpop.f32.mrb[0].mxu0
  %v173 = vadd.f32 0.0, %v172
  %v174 = vpop.f32.mrb[0].mxu0
  %175 = vmatprep.mubr.f32.mxu0 %v91
  %176 = vmatmul.mubr.f32.gmra.mrb[0].mxu0 %v59
  %v177 = vpop.f32.mrb[0].mxu0
  %v178 = vadd.f32 0.0, %v177
  %v179 = vpop.f32.mrb[0].mxu0
  %180 = vdwg.mxu0
  %vm181 = vcmask 130048
  %182 = vst.msk [vmem:[%s1] sm:$0xff] %vm181, %v173
  %183 = vst.msk [vmem:[%s1 + $0x8] sm:$0xff] %vm181, %v178
  %v184 = vsel %vm181, %v10, 0.0
  %v185 = vsel %vm181, %v11, 0.0
  %v186 = vadd.f32 %v184, %v185
  %v187 = vsel %vm181, %v12, 0.0
  %v188 = vadd.f32 %v186, %v187
  %v189 = vsel %vm181, %v13, 0.0
  %v190 = vadd.f32 %v188, %v189
  %v191 = vsel %vm181, %v14, 0.0
  %v192 = vadd.f32 %v190, %v191
  %v193 = vsel %vm181, %v15, 0.0
  %v194 = vadd.f32 %v192, %v193
  %v195 = vsel %vm181, %v16, 0.0
  %v196 = vadd.f32 %v194, %v195
  %v197 = vsel %vm181, %v17, 0.0
  %v198 = vadd.f32 %v196, %v197
  %v199 = vsel %vm181, %v18, 0.0
  %v200 = vadd.f32 %v198, %v199
  %v201 = vsel %vm181, %v19, 0.0
  %v202 = vadd.f32 %v200, %v201
  %v203 = vsel %vm181, %v20, 0.0
  %v204 = vadd.f32 %v202, %v203
  %v205 = vsel %vm181, %v21, 0.0
  %v206 = vadd.f32 %v204, %v205
  %v207 = vsel %vm181, %v22, 0.0
  %v208 = vadd.f32 %v206, %v207
  %v209 = vsel %vm181, %v23, 0.0
  %v210 = vadd.f32 %v208, %v209
  %v211 = vsel %vm181, %v24, 0.0
  %v212 = vadd.f32 %v210, %v211
  %v213 = vsel %vm181, %v25, 0.0
  %v214 = vadd.f32 %v212, %v213
  %v215 = vsel %vm181, %v26, 0.0
  %v216 = vadd.f32 %v214, %v215
  %v217 = vsel %vm181, %v27, 0.0
  %v218 = vadd.f32 %v216, %v217
  %v219 = vsel %vm181, %v28, 0.0
  %v220 = vadd.f32 %v218, %v219
  %v221 = vsel %vm181, %v29, 0.0
  %v222 = vadd.f32 %v220, %v221
  %v223 = vsel %vm181, %v30, 0.0
  %v224 = vadd.f32 %v222, %v223
  %v225 = vsel %vm181, %v31, 0.0
  %v226 = vadd.f32 %v224, %v225
  %v227 = vsel %vm181, %v32, 0.0
  %v228 = vadd.f32 %v226, %v227
  %v229 = vsel %vm181, %v33, 0.0
  %v230 = vadd.f32 %v228, %v229
  %v231 = vsel %vm181, %v34, 0.0
  %v232 = vadd.f32 %v230, %v231
  %v233 = vsel %vm181, %v35, 0.0
  %v234 = vadd.f32 %v232, %v233
  %v235 = vsel %vm181, %v36, 0.0
  %v236 = vadd.f32 %v234, %v235
  %v237 = vsel %vm181, %v37, 0.0
  %v238 = vadd.f32 %v236, %v237
  %v239 = vsel %vm181, %v38, 0.0
  %v240 = vadd.f32 %v238, %v239
  %v241 = vsel %vm181, %v39, 0.0
  %v242 = vadd.f32 %v240, %v241
  %v243 = vsel %vm181, %v40, 0.0
  %v244 = vadd.f32 %v242, %v243
  %v245 = vsel %vm181, %v41, 0.0
  %v246 = vadd.f32 %v244, %v245
  %v247 = vrot.slane %v246, 4
  %v248 = vadd.f32 %v246, %v247
  %v249 = vrot.slane %v248, 2
  %v250 = vadd.f32 %v248, %v249
  %v251 = vrot.slane %v250, 1
  %v252 = vadd.f32 %v250, %v251
  %vm253 = vcmask 122880
  %254 = vst.msk [vmem:[%s2] sm:$0x1] %vm253, %v252
  // Predicated region
  $region6: #{transition_up_3d.2} parent=0 // pred_check
    _
  $region7: #{transition_up_3d.2} parent=0 // pred_check_branch
    %256 = sbr.rel (0) target = $region9
  $region8: #{transition_up_3d.2} parent=0 // pred_region
    _
  $region9: #{transition_up_3d.2} parent=0 // pred_fallthru
    _
  // Predicated region
  $region10: #{transition_up_3d.2} parent=0 // pred_check
    _
  $region11: #{transition_up_3d.2} parent=0 // pred_check_branch
    %258 = sbr.rel (0) target = $region13
  $region12: #{transition_up_3d.2} parent=0 // pred_region
    _
  $region13: #{transition_up_3d.2} parent=0 // pred_fallthru
    _
  // Predicated region
  $region14: #{transition_up_3d.2} parent=0 // pred_check
    _
  $region15: #{transition_up_3d.2} parent=0 // pred_check_branch
    %260 = sbr.rel (0) target = $region17
  $region16: #{transition_up_3d.2} parent=0 // pred_region
    _
  $region17: #{transition_up_3d.2} parent=0 // pred_fallthru
    _
  // Predicated region
  $region18: #{transition_up_3d.2} parent=0 // pred_check
    _
  $region19: #{transition_up_3d.2} parent=0 // pred_check_branch
    %262 = sbr.rel (0) target = $region21
  $region20: #{transition_up_3d.2} parent=0 // pred_region
    _
  $region21: #{transition_up_3d.2} parent=0 // pred_fallthru
    _

// kernel: transition_up_3d.3
$region0: #{transition_up_3d.3}
  #allocation0 [shape = 'u32[]', space=smem, size = 0x4, offset = 0x4, fixed_abs, tag = 'smem constant byte address 0x4 - core index']
  #allocation1 [shape = 'u32[144,128]{1,0:T(1,128)}', space=vmem, size = 0x12000, scoped, tag = 'internal scratch']
  %s0 = inlined_call_operand.vmem [shape: f32[256,16], index: 0, kind: input, shape index: {}]
  %s1 = inlined_call_operand.vmem [shape: f32[16,128], index: 1, kind: input, shape index: {}]
  %s2 = inlined_call_operand.vmem [shape: f32[1,128], index: 2, kind: input, shape index: {}]
  %s3 = inlined_call_operand.vmem [shape: f32[256,128], index: 3, kind: output, shape index: {}]
  %s4 = sld [smem:[#allocation0]]
  $region22: #{transition_up_3d.3} parent=0
    _
  %s6 = ssub.s32 1, %s4
  %s7 = scalar_select 0, %s6, %s4
  // Predicated region
  $region2: #{transition_up_3d.3} parent=0 // pred_check
    _
  $region3: #{transition_up_3d.3} parent=0 // pred_check_branch
    %9 = sbr.rel (0) target = $region5
  $region4: #{transition_up_3d.3} parent=0 // pred_region
    _
  $region5: #{transition_up_3d.3} parent=0 // pred_fallthru
    _
  // Predicated region
  $region6: #{transition_up_3d.3} parent=0 // pred_check
    _
  $region7: #{transition_up_3d.3} parent=0 // pred_check_branch
    %11 = sbr.rel (0) target = $region9
  $region8: #{transition_up_3d.3} parent=0 // pred_region
    _
  $region9: #{transition_up_3d.3} parent=0 // pred_fallthru
    _
  // Predicated region
  $region10: #{transition_up_3d.3} parent=0 // pred_check
    _
  $region11: #{transition_up_3d.3} parent=0 // pred_check_branch
    %13 = sbr.rel (0) target = $region13
  $region12: #{transition_up_3d.3} parent=0 // pred_region
    _
  $region13: #{transition_up_3d.3} parent=0 // pred_fallthru
    _
  %v14 = vld [vmem:[%s0] sm:$0xff]
  %v15 = vld [vmem:[%s0 + $0x8] sm:$0xff]
  %v16 = vld [vmem:[%s0 + $0x10] sm:$0xff]
  %v17 = vld [vmem:[%s0 + $0x18] sm:$0xff]
  %v18 = vld [vmem:[%s0 + $0x20] sm:$0xff]
  %v19 = vld [vmem:[%s0 + $0x28] sm:$0xff]
  %v20 = vld [vmem:[%s0 + $0x30] sm:$0xff]
  %v21 = vld [vmem:[%s0 + $0x38] sm:$0xff]
  %v22 = vld [vmem:[%s0 + $0x40] sm:$0xff]
  %v23 = vld [vmem:[%s0 + $0x48] sm:$0xff]
  %v24 = vld [vmem:[%s0 + $0x50] sm:$0xff]
  %v25 = vld [vmem:[%s0 + $0x58] sm:$0xff]
  %v26 = vld [vmem:[%s0 + $0x60] sm:$0xff]
  %v27 = vld [vmem:[%s0 + $0x68] sm:$0xff]
  %v28 = vld [vmem:[%s0 + $0x70] sm:$0xff]
  %v29 = vld [vmem:[%s0 + $0x78] sm:$0xff]
  %v30 = vld [vmem:[%s0 + $0x80] sm:$0xff]
  %v31 = vld [vmem:[%s0 + $0x88] sm:$0xff]
  %v32 = vld [vmem:[%s0 + $0x90] sm:$0xff]
  %v33 = vld [vmem:[%s0 + $0x98] sm:$0xff]
  %v34 = vld [vmem:[%s0 + $0xa0] sm:$0xff]
  %v35 = vld [vmem:[%s0 + $0xa8] sm:$0xff]
  %v36 = vld [vmem:[%s0 + $0xb0] sm:$0xff]
  %v37 = vld [vmem:[%s0 + $0xb8] sm:$0xff]
  %v38 = vld [vmem:[%s0 + $0xc0] sm:$0xff]
  %v39 = vld [vmem:[%s0 + $0xc8] sm:$0xff]
  %v40 = vld [vmem:[%s0 + $0xd0] sm:$0xff]
  %v41 = vld [vmem:[%s0 + $0xd8] sm:$0xff]
  %v42 = vld [vmem:[%s0 + $0xe0] sm:$0xff]
  %v43 = vld [vmem:[%s0 + $0xe8] sm:$0xff]
  %v44 = vld [vmem:[%s0 + $0xf0] sm:$0xff]
  %v45 = vld [vmem:[%s0 + $0xf8] sm:$0xff]
  %v46 = vld [vmem:[%s1] sm:$0xff]
  %v47 = vld [vmem:[%s1 + $0x8] sm:$0xff]
  %v48 = vld [vmem:[%s2] sm:$0x1]
  %v50 = vlaneseq
  %v51 = vshrl.u32 %v50, 7
  %v52 = vsub.s32 0, %v51
  %v53 = vrot.slane %v48, %v52
  %vm55 = vcmask 130048
  %v57 = vsel %vm55, %v14, 0
  %v60 = vsel %vm55, %v15, 0
  %v63 = vsel %vm55, %v16, 0
  %v66 = vsel %vm55, %v17, 0
  %v69 = vsel %vm55, %v18, 0
  %v72 = vsel %vm55, %v19, 0
  %v75 = vsel %vm55, %v20, 0
  %v78 = vsel %vm55, %v21, 0
  %v81 = vsel %vm55, %v22, 0
  %v84 = vsel %vm55, %v23, 0
  %v87 = vsel %vm55, %v24, 0
  %v90 = vsel %vm55, %v25, 0
  %v93 = vsel %vm55, %v26, 0
  %v96 = vsel %vm55, %v27, 0
  %v99 = vsel %vm55, %v28, 0
  %v102 = vsel %vm55, %v29, 0
  %v105 = vsel %vm55, %v30, 0
  %v108 = vsel %vm55, %v31, 0
  %v111 = vsel %vm55, %v32, 0
  %v114 = vsel %vm55, %v33, 0
  %v117 = vsel %vm55, %v34, 0
  %v120 = vsel %vm55, %v35, 0
  %v123 = vsel %vm55, %v36, 0
  %v126 = vsel %vm55, %v37, 0
  %v129 = vsel %vm55, %v38, 0
  %v132 = vsel %vm55, %v39, 0
  %v135 = vsel %vm55, %v40, 0
  %v138 = vsel %vm55, %v41, 0
  %v141 = vsel %vm55, %v42, 0
  %v144 = vsel %vm55, %v43, 0
  %v147 = vsel %vm55, %v44, 0
  %v150 = vsel %vm55, %v45, 0
  %152 = vmatprep.subr.mxu0 0.0
  %153 = vmatpush1.msra.mxu0 %v46
  %154 = vmatprep.subr.mxu0 0.0
  %155 = vmatpush1.msra.mxu0 %v47
  %156 = vmatprep.subr.mxu0 0.0
  %157 = vmatpush1.msra.mxu0 0.0
  %158 = vmatprep.subr.mxu0 0.0
  %159 = vmatpush1.msra.mxu0 0.0
  %160 = vmatprep.subr.mxu0 0.0
  %161 = vmatpush1.msra.mxu0 0.0
  %162 = vmatprep.subr.mxu0 0.0
  %163 = vmatpush1.msra.mxu0 0.0
  %164 = vmatprep.subr.mxu0 0.0
  %165 = vmatpush1.msra.mxu0 0.0
  %166 = vmatprep.subr.mxu0 0.0
  %167 = vmatpush1.msra.mxu0 0.0
  %168 = vmatprep.subr.mxu0 0.0
  %169 = vmatpush1.msra.mxu0 0.0
  %170 = vmatprep.subr.mxu0 0.0
  %171 = vmatpush1.msra.mxu0 0.0
  %172 = vmatprep.subr.mxu0 0.0
  %173 = vmatpush1.msra.mxu0 0.0
  %174 = vmatprep.subr.mxu0 0.0
  %175 = vmatpush1.msra.mxu0 0.0
  %176 = vmatprep.subr.mxu0 0.0
  %177 = vmatpush1.msra.mxu0 0.0
  %178 = vmatprep.subr.mxu0 0.0
  %179 = vmatpush1.msra.mxu0 0.0
  %180 = vmatprep.subr.mxu0 0.0
  %181 = vmatpush1.msra.mxu0 0.0
  %182 = vmatprep.subr.mxu0 0.0
  %183 = vmatpush1.msra.mxu0 0.0
  %184 = vmatprep.subr.mxu0 0.0
  %185 = vmatpush1.msra.mxu0 0.0
  %186 = vmatprep.subr.mxu0 0.0
  %187 = vmatpush1.msra.mxu0 0.0
  %188 = vmatprep.subr.mxu0 0.0
  %189 = vmatpush1.msra.mxu0 0.0
  %190 = vmatprep.subr.mxu0 0.0
  %191 = vmatpush1.msra.mxu0 0.0
  %192 = vmatprep.subr.mxu0 0.0
  %193 = vmatpush1.msra.mxu0 0.0
  %194 = vmatprep.subr.mxu0 0.0
  %195 = vmatpush1.msra.mxu0 0.0
  %196 = vmatprep.subr.mxu0 0.0
  %197 = vmatpush1.msra.mxu0 0.0
  %198 = vmatprep.subr.mxu0 0.0
  %199 = vmatpush1.msra.mxu0 0.0
  %200 = vmatprep.subr.mxu0 0.0
  %201 = vmatpush1.msra.mxu0 0.0
  %202 = vmatprep.subr.mxu0 0.0
  %203 = vmatpush1.msra.mxu0 0.0
  %204 = vmatprep.subr.mxu0 0.0
  %205 = vmatpush1.msra.mxu0 0.0
  %206 = vmatprep.subr.mxu0 0.0
  %207 = vmatpush1.msra.mxu0 0.0
  %208 = vmatprep.subr.mxu0 0.0
  %209 = vmatpush1.msra.mxu0 0.0
  %210 = vmatprep.subr.mxu0 0.0
  %211 = vmatpush1.msra.mxu0 0.0
  %212 = vmatprep.subr.mxu0 0.0
  %213 = vmatpush1.msra.mxu0 0.0
  %214 = vmatprep.subr.mxu0 0.0
  %215 = vmatpush1.msra.mxu0 0.0
  %216 = vmatprep.mubr.f32.mxu0 0.0
  %217 = vmatmul.mubr.f32.gmra.mrb[0].mxu0 %v57
  %v218 = vpop.f32.mrb[0].mxu0
  %v219 = vadd.f32 %v53, %v218
  %v220 = vpop.f32.mrb[0].mxu0
  %221 = vmatprep.mubr.f32.mxu0 0.0
  %222 = vmatmul.mubr.f32.gmra.mrb[0].mxu0 %v60
  %v223 = vpop.f32.mrb[0].mxu0
  %v224 = vadd.f32 %v53, %v223
  %v225 = vpop.f32.mrb[0].mxu0
  %226 = vmatprep.mubr.f32.mxu0 0.0
  %227 = vmatmul.mubr.f32.gmra.mrb[0].mxu0 %v63
  %v228 = vpop.f32.mrb[0].mxu0
  %v229 = vadd.f32 %v53, %v228
  %v230 = vpop.f32.mrb[0].mxu0
  %231 = vmatprep.mubr.f32.mxu0 0.0
  %232 = vmatmul.mubr.f32.gmra.mrb[0].mxu0 %v66
  %v233 = vpop.f32.mrb[0].mxu0
  %v234 = vadd.f32 %v53, %v233
  %v235 = vpop.f32.mrb[0].mxu0
  %236 = vmatprep.mubr.f32.mxu0 0.0
  %237 = vmatmul.mubr.f32.gmra.mrb[0].mxu0 %v69
  %v238 = vpop.f32.mrb[0].mxu0
  %v239 = vadd.f32 %v53, %v238
  %v240 = vpop.f32.mrb[0].mxu0
  %241 = vmatprep.mubr.f32.mxu0 0.0
  %242 = vmatmul.mubr.f32.gmra.mrb[0].mxu0 %v72
  %v243 = vpop.f32.mrb[0].mxu0
  %v244 = vadd.f32 %v53, %v243
  %v245 = vpop.f32.mrb[0].mxu0
  %246 = vmatprep.mubr.f32.mxu0 0.0
  %247 = vmatmul.mubr.f32.gmra.mrb[0].mxu0 %v75
  %v248 = vpop.f32.mrb[0].mxu0
  %v249 = vadd.f32 %v53, %v248
  %v250 = vpop.f32.mrb[0].mxu0
  %251 = vmatprep.mubr.f32.mxu0 0.0
  %252 = vmatmul.mubr.f32.gmra.mrb[0].mxu0 %v78
  %v253 = vpop.f32.mrb[0].mxu0
  %v254 = vadd.f32 %v53, %v253
  %v255 = vpop.f32.mrb[0].mxu0
  %256 = vmatprep.mubr.f32.mxu0 0.0
  %257 = vmatmul.mubr.f32.gmra.mrb[0].mxu0 %v81
  %v258 = vpop.f32.mrb[0].mxu0
  %v259 = vadd.f32 %v53, %v258
  %v260 = vpop.f32.mrb[0].mxu0
  %261 = vmatprep.mubr.f32.mxu0 0.0
  %262 = vmatmul.mubr.f32.gmra.mrb[0].mxu0 %v84
  %v263 = vpop.f32.mrb[0].mxu0
  %v264 = vadd.f32 %v53, %v263
  %v265 = vpop.f32.mrb[0].mxu0
  %266 = vmatprep.mubr.f32.mxu0 0.0
  %267 = vmatmul.mubr.f32.gmra.mrb[0].mxu0 %v87
  %v268 = vpop.f32.mrb[0].mxu0
  %v269 = vadd.f32 %v53, %v268
  %v270 = vpop.f32.mrb[0].mxu0
  %271 = vmatprep.mubr.f32.mxu0 0.0
  %272 = vmatmul.mubr.f32.gmra.mrb[0].mxu0 %v90
  %v273 = vpop.f32.mrb[0].mxu0
  %v274 = vadd.f32 %v53, %v273
  %v275 = vpop.f32.mrb[0].mxu0
  %276 = vmatprep.mubr.f32.mxu0 0.0
  %277 = vmatmul.mubr.f32.gmra.mrb[0].mxu0 %v93
  %v278 = vpop.f32.mrb[0].mxu0
  %v279 = vadd.f32 %v53, %v278
  %v280 = vpop.f32.mrb[0].mxu0
  %281 = vmatprep.mubr.f32.mxu0 0.0
  %282 = vmatmul.mubr.f32.gmra.mrb[0].mxu0 %v96
  %v283 = vpop.f32.mrb[0].mxu0
  %v284 = vadd.f32 %v53, %v283
  %v285 = vpop.f32.mrb[0].mxu0
  %286 = vmatprep.mubr.f32.mxu0 0.0
  %287 = vmatmul.mubr.f32.gmra.mrb[0].mxu0 %v99
  %v288 = vpop.f32.mrb[0].mxu0
  %v289 = vadd.f32 %v53, %v288
  %v290 = vpop.f32.mrb[0].mxu0
  %291 = vmatprep.mubr.f32.mxu0 0.0
  %292 = vmatmul.mubr.f32.gmra.mrb[0].mxu0 %v102
  %v293 = vpop.f32.mrb[0].mxu0
  %v294 = vadd.f32 %v53, %v293
  %v295 = vpop.f32.mrb[0].mxu0
  %296 = vmatprep.mubr.f32.mxu0 0.0
  %297 = vmatmul.mubr.f32.gmra.mrb[0].mxu0 %v105
  %v298 = vpop.f32.mrb[0].mxu0
  %v299 = vadd.f32 %v53, %v298
  %v300 = vpop.f32.mrb[0].mxu0
  %301 = vmatprep.mubr.f32.mxu0 0.0
  %302 = vmatmul.mubr.f32.gmra.mrb[0].mxu0 %v108
  %v303 = vpop.f32.mrb[0].mxu0
  %v304 = vadd.f32 %v53, %v303
  %v305 = vpop.f32.mrb[0].mxu0
  %306 = vmatprep.mubr.f32.mxu0 0.0
  %307 = vmatmul.mubr.f32.gmra.mrb[0].mxu0 %v111
  %v308 = vpop.f32.mrb[0].mxu0
  %v309 = vadd.f32 %v53, %v308
  %v310 = vpop.f32.mrb[0].mxu0
  %311 = vmatprep.mubr.f32.mxu0 0.0
  %312 = vmatmul.mubr.f32.gmra.mrb[0].mxu0 %v114
  %v313 = vpop.f32.mrb[0].mxu0
  %v314 = vadd.f32 %v53, %v313
  %v315 = vpop.f32.mrb[0].mxu0
  %316 = vmatprep.mubr.f32.mxu0 0.0
  %317 = vmatmul.mubr.f32.gmra.mrb[0].mxu0 %v117
  %v318 = vpop.f32.mrb[0].mxu0
  %v319 = vadd.f32 %v53, %v318
  %v320 = vpop.f32.mrb[0].mxu0
  %321 = vmatprep.mubr.f32.mxu0 0.0
  %322 = vmatmul.mubr.f32.gmra.mrb[0].mxu0 %v120
  %v323 = vpop.f32.mrb[0].mxu0
  %v324 = vadd.f32 %v53, %v323
  %v325 = vpop.f32.mrb[0].mxu0
  %326 = vmatprep.mubr.f32.mxu0 0.0
  %327 = vmatmul.mubr.f32.gmra.mrb[0].mxu0 %v123
  %v328 = vpop.f32.mrb[0].mxu0
  %v329 = vadd.f32 %v53, %v328
  %v330 = vpop.f32.mrb[0].mxu0
  %331 = vmatprep.mubr.f32.mxu0 0.0
  %332 = vmatmul.mubr.f32.gmra.mrb[0].mxu0 %v126
  %v333 = vpop.f32.mrb[0].mxu0
  %v334 = vadd.f32 %v53, %v333
  %v335 = vpop.f32.mrb[0].mxu0
  %336 = vmatprep.mubr.f32.mxu0 0.0
  %337 = vmatmul.mubr.f32.gmra.mrb[0].mxu0 %v129
  %v338 = vpop.f32.mrb[0].mxu0
  %v339 = vadd.f32 %v53, %v338
  %v340 = vpop.f32.mrb[0].mxu0
  %341 = vmatprep.mubr.f32.mxu0 0.0
  %342 = vmatmul.mubr.f32.gmra.mrb[0].mxu0 %v132
  %v343 = vpop.f32.mrb[0].mxu0
  %v344 = vadd.f32 %v53, %v343
  %v345 = vpop.f32.mrb[0].mxu0
  %346 = vmatprep.mubr.f32.mxu0 0.0
  %347 = vmatmul.mubr.f32.gmra.mrb[0].mxu0 %v135
  %v348 = vpop.f32.mrb[0].mxu0
  %v349 = vadd.f32 %v53, %v348
  %v350 = vpop.f32.mrb[0].mxu0
  %351 = vmatprep.mubr.f32.mxu0 0.0
  %352 = vmatmul.mubr.f32.gmra.mrb[0].mxu0 %v138
  %v353 = vpop.f32.mrb[0].mxu0
  %v354 = vadd.f32 %v53, %v353
  %v355 = vpop.f32.mrb[0].mxu0
  %356 = vmatprep.mubr.f32.mxu0 0.0
  %357 = vmatmul.mubr.f32.gmra.mrb[0].mxu0 %v141
  %v358 = vpop.f32.mrb[0].mxu0
  %v359 = vadd.f32 %v53, %v358
  %v360 = vpop.f32.mrb[0].mxu0
  %361 = vmatprep.mubr.f32.mxu0 0.0
  %362 = vmatmul.mubr.f32.gmra.mrb[0].mxu0 %v144
  %v363 = vpop.f32.mrb[0].mxu0
  %v364 = vadd.f32 %v53, %v363
  %v365 = vpop.f32.mrb[0].mxu0
  %366 = vmatprep.mubr.f32.mxu0 0.0
  %367 = vmatmul.mubr.f32.gmra.mrb[0].mxu0 %v147
  %v368 = vpop.f32.mrb[0].mxu0
  %v369 = vadd.f32 %v53, %v368
  %v370 = vpop.f32.mrb[0].mxu0
  %371 = vmatprep.mubr.f32.mxu0 0.0
  %372 = vmatmul.mubr.f32.gmra.mrb[0].mxu0 %v150
  %v373 = vpop.f32.mrb[0].mxu0
  %v374 = vadd.f32 %v53, %v373
  %v375 = vpop.f32.mrb[0].mxu0
  %376 = vdwg.mxu0
  %vm377 = vcmp.gt.f32.partialorder %v219, 0.0
  %vm378 = vcmp.gt.f32.partialorder %v224, 0.0
  %vm379 = vcmp.gt.f32.partialorder %v229, 0.0
  %vm380 = vcmp.gt.f32.partialorder %v234, 0.0
  %vm381 = vcmp.gt.f32.partialorder %v239, 0.0
  %vm382 = vcmp.gt.f32.partialorder %v244, 0.0
  %vm383 = vcmp.gt.f32.partialorder %v249, 0.0
  %vm384 = vcmp.gt.f32.partialorder %v254, 0.0
  %vm385 = vcmp.gt.f32.partialorder %v259, 0.0
  %vm386 = vcmp.gt.f32.partialorder %v264, 0.0
  %vm387 = vcmp.gt.f32.partialorder %v269, 0.0
  %vm388 = vcmp.gt.f32.partialorder %v274, 0.0
  %vm389 = vcmp.gt.f32.partialorder %v279, 0.0
  %vm390 = vcmp.gt.f32.partialorder %v284, 0.0
  %vm391 = vcmp.gt.f32.partialorder %v289, 0.0
  %vm392 = vcmp.gt.f32.partialorder %v294, 0.0
  %vm393 = vcmp.gt.f32.partialorder %v299, 0.0
  %vm394 = vcmp.gt.f32.partialorder %v304, 0.0
  %vm395 = vcmp.gt.f32.partialorder %v309, 0.0
  %vm396 = vcmp.gt.f32.partialorder %v314, 0.0
  %vm397 = vcmp.gt.f32.partialorder %v319, 0.0
  %vm398 = vcmp.gt.f32.partialorder %v324, 0.0
  %vm399 = vcmp.gt.f32.partialorder %v329, 0.0
  %vm400 = vcmp.gt.f32.partialorder %v334, 0.0
  %vm401 = vcmp.gt.f32.partialorder %v339, 0.0
  %vm402 = vcmp.gt.f32.partialorder %v344, 0.0
  %vm403 = vcmp.gt.f32.partialorder %v349, 0.0
  %vm404 = vcmp.gt.f32.partialorder %v354, 0.0
  %vm405 = vcmp.gt.f32.partialorder %v359, 0.0
  %vm406 = vcmp.gt.f32.partialorder %v364, 0.0
  %vm407 = vcmp.gt.f32.partialorder %v369, 0.0
  %vm408 = vcmp.gt.f32.partialorder %v374, 0.0
  %v409 = vmul.f32 %v219, 1.442695
  %v410 = vpow.pop %v409
  %v411 = vmul.f32 %v224, 1.442695
  %v412 = vpow.pop %v411
  %v413 = vmul.f32 %v229, 1.442695
  %v414 = vpow.pop %v413
  %v415 = vmul.f32 %v234, 1.442695
  %v416 = vpow.pop %v415
  %v417 = vmul.f32 %v239, 1.442695
  %v418 = vpow.pop %v417
  %v419 = vmul.f32 %v244, 1.442695
  %v420 = vpow.pop %v419
  %v421 = vmul.f32 %v249, 1.442695
  %v422 = vpow.pop %v421
  %v423 = vmul.f32 %v254, 1.442695
  %v424 = vpow.pop %v423
  %v425 = vmul.f32 %v259, 1.442695
  %v426 = vpow.pop %v425
  %v427 = vmul.f32 %v264, 1.442695
  %v428 = vpow.pop %v427
  %v429 = vmul.f32 %v269, 1.442695
  %v430 = vpow.pop %v429
  %v431 = vmul.f32 %v274, 1.442695
  %v432 = vpow.pop %v431
  %v433 = vmul.f32 %v279, 1.442695
  %v434 = vpow.pop %v433
  %v435 = vmul.f32 %v284, 1.442695
  %v436 = vpow.pop %v435
  %v437 = vmul.f32 %v289, 1.442695
  %v438 = vpow.pop %v437
  %v439 = vmul.f32 %v294, 1.442695
  %v440 = vpow.pop %v439
  %v441 = vmul.f32 %v299, 1.442695
  %v442 = vpow.pop %v441
  %v443 = vmul.f32 %v304, 1.442695
  %v444 = vpow.pop %v443
  %v445 = vmul.f32 %v309, 1.442695
  %v446 = vpow.pop %v445
  %v447 = vmul.f32 %v314, 1.442695
  %v448 = vpow.pop %v447
  %v449 = vmul.f32 %v319, 1.442695
  %v450 = vpow.pop %v449
  %v451 = vmul.f32 %v324, 1.442695
  %v452 = vpow.pop %v451
  %v453 = vmul.f32 %v329, 1.442695
  %v454 = vpow.pop %v453
  %v455 = vmul.f32 %v334, 1.442695
  %v456 = vpow.pop %v455
  %v457 = vmul.f32 %v339, 1.442695
  %v458 = vpow.pop %v457
  %v459 = vmul.f32 %v344, 1.442695
  %v460 = vpow.pop %v459
  %v461 = vmul.f32 %v349, 1.442695
  %v462 = vpow.pop %v461
  %v463 = vmul.f32 %v354, 1.442695
  %v464 = vpow.pop %v463
  %v465 = vmul.f32 %v359, 1.442695
  %v466 = vpow.pop %v465
  %v467 = vmul.f32 %v364, 1.442695
  %v468 = vpow.pop %v467
  %v469 = vmul.f32 %v369, 1.442695
  %v470 = vpow.pop %v469
  %v471 = vmul.f32 %v374, 1.442695
  %v472 = vpow.pop %v471
  %v473 = vsub.f32 %v410, 1.0
  %v474 = vsub.f32 %v412, 1.0
  %v475 = vsub.f32 %v414, 1.0
  %v476 = vsub.f32 %v416, 1.0
  %v477 = vsub.f32 %v418, 1.0
  %v478 = vsub.f32 %v420, 1.0
  %v479 = vsub.f32 %v422, 1.0
  %v480 = vsub.f32 %v424, 1.0
  %v481 = vsub.f32 %v426, 1.0
  %v482 = vsub.f32 %v428, 1.0
  %v483 = vsub.f32 %v430, 1.0
  %v484 = vsub.f32 %v432, 1.0
  %v485 = vsub.f32 %v434, 1.0
  %v486 = vsub.f32 %v436, 1.0
  %v487 = vsub.f32 %v438, 1.0
  %v488 = vsub.f32 %v440, 1.0
  %v489 = vsub.f32 %v442, 1.0
  %v490 = vsub.f32 %v444, 1.0
  %v491 = vsub.f32 %v446, 1.0
  %v492 = vsub.f32 %v448, 1.0
  %v493 = vsub.f32 %v450, 1.0
  %v494 = vsub.f32 %v452, 1.0
  %v495 = vsub.f32 %v454, 1.0
  %v496 = vsub.f32 %v456, 1.0
  %v497 = vsub.f32 %v458, 1.0
  %v498 = vsub.f32 %v460, 1.0
  %v499 = vsub.f32 %v462, 1.0
  %v500 = vsub.f32 %v464, 1.0
  %v501 = vsub.f32 %v466, 1.0
  %v502 = vsub.f32 %v468, 1.0
  %v503 = vsub.f32 %v470, 1.0
  %v504 = vsub.f32 %v472, 1.0
  %v505 = vsel %vm377, %v219, %v473
  %v506 = vsel %vm378, %v224, %v474
  %v507 = vsel %vm379, %v229, %v475
  %v508 = vsel %vm380, %v234, %v476
  %v509 = vsel %vm381, %v239, %v477
  %v510 = vsel %vm382, %v244, %v478
  %v511 = vsel %vm383, %v249, %v479
  %v512 = vsel %vm384, %v254, %v480
  %v513 = vsel %vm385, %v259, %v481
  %v514 = vsel %vm386, %v264, %v482
  %v515 = vsel %vm387, %v269, %v483
  %v516 = vsel %vm388, %v274, %v484
  %v517 = vsel %vm389, %v279, %v485
  %v518 = vsel %vm390, %v284, %v486
  %v519 = vsel %vm391, %v289, %v487
  %v520 = vsel %vm392, %v294, %v488
  %v521 = vsel %vm393, %v299, %v489
  %v522 = vsel %vm394, %v304, %v490
  %v523 = vsel %vm395, %v309, %v491
  %v524 = vsel %vm396, %v314, %v492
  %v525 = vsel %vm397, %v319, %v493
  %v526 = vsel %vm398, %v324, %v494
  %v527 = vsel %vm399, %v329, %v495
  %v528 = vsel %vm400, %v334, %v496
  %v529 = vsel %vm401, %v339, %v497
  %v530 = vsel %vm402, %v344, %v498
  %v531 = vsel %vm403, %v349, %v499
  %v532 = vsel %vm404, %v354, %v500
  %v533 = vsel %vm405, %v359, %v501
  %v534 = vsel %vm406, %v364, %v502
  %v535 = vsel %vm407, %v369, %v503
  %v536 = vsel %vm408, %v374, %v504
  %537 = vst [vmem:[%s3] sm:$0xff] %v505
  %538 = vst [vmem:[%s3 + $0x8] sm:$0xff] %v506
  %539 = vst [vmem:[%s3 + $0x10] sm:$0xff] %v507
  %540 = vst [vmem:[%s3 + $0x18] sm:$0xff] %v508
  %541 = vst [vmem:[%s3 + $0x20] sm:$0xff] %v509
  %542 = vst [vmem:[%s3 + $0x28] sm:$0xff] %v510
  %543 = vst [vmem:[%s3 + $0x30] sm:$0xff] %v511
  %544 = vst [vmem:[%s3 + $0x38] sm:$0xff] %v512
  %545 = vst [vmem:[%s3 + $0x40] sm:$0xff] %v513
  %546 = vst [vmem:[%s3 + $0x48] sm:$0xff] %v514
  %547 = vst [vmem:[%s3 + $0x50] sm:$0xff] %v515
  %548 = vst [vmem:[%s3 + $0x58] sm:$0xff] %v516
  %549 = vst [vmem:[%s3 + $0x60] sm:$0xff] %v517
  %550 = vst [vmem:[%s3 + $0x68] sm:$0xff] %v518
  %551 = vst [vmem:[%s3 + $0x70] sm:$0xff] %v519
  %552 = vst [vmem:[%s3 + $0x78] sm:$0xff] %v520
  %553 = vst [vmem:[%s3 + $0x80] sm:$0xff] %v521
  %554 = vst [vmem:[%s3 + $0x88] sm:$0xff] %v522
  %555 = vst [vmem:[%s3 + $0x90] sm:$0xff] %v523
  %556 = vst [vmem:[%s3 + $0x98] sm:$0xff] %v524
  %557 = vst [vmem:[%s3 + $0xa0] sm:$0xff] %v525
  %558 = vst [vmem:[%s3 + $0xa8] sm:$0xff] %v526
  %559 = vst [vmem:[%s3 + $0xb0] sm:$0xff] %v527
  %560 = vst [vmem:[%s3 + $0xb8] sm:$0xff] %v528
  %561 = vst [vmem:[%s3 + $0xc0] sm:$0xff] %v529
  %562 = vst [vmem:[%s3 + $0xc8] sm:$0xff] %v530
  %563 = vst [vmem:[%s3 + $0xd0] sm:$0xff] %v531
  %564 = vst [vmem:[%s3 + $0xd8] sm:$0xff] %v532
  %565 = vst [vmem:[%s3 + $0xe0] sm:$0xff] %v533
  %566 = vst [vmem:[%s3 + $0xe8] sm:$0xff] %v534
  %567 = vst [vmem:[%s3 + $0xf0] sm:$0xff] %v535
  %568 = vst [vmem:[%s3 + $0xf8] sm:$0xff] %v536
  // Predicated region
  $region14: #{transition_up_3d.3} parent=0 // pred_check
    _
  $region15: #{transition_up_3d.3} parent=0 // pred_check_branch
    %570 = sbr.rel (0) target = $region17
  $region16: #{transition_up_3d.3} parent=0 // pred_region
    _
  $region17: #{transition_up_3d.3} parent=0 // pred_fallthru
    _
  // Predicated region
  $region18: #{transition_up_3d.3} parent=0 // pred_check
    _
  $region19: #{transition_up_3d.3} parent=0 // pred_check_branch
    %572 = sbr.rel (0) target = $region21
  $region20: #{transition_up_3d.3} parent=0 // pred_region
    _
  $region21: #{transition_up_3d.3} parent=0 // pred_fallthru
    _

</llo_original>
